<compile_context>
chip_gen: v7x
topology: tpu7x:2x2x1
jax: 0.10.0
libtpu: 0.0.40
codegen_flags: <defaults>
</compile_context>

<pallas_src>
import functools
import math

import jax
import jax.numpy as jnp
from jax import lax
from jax.experimental import pallas as pl
from jax.experimental.pallas import tpu as pltpu

_LANE = 128
_SUBLANE = 8


def _round_up(x, m):
    return (x + m - 1) // m * m


def _tile_config():
    """(per-input tile byte target, vmem_limit_bytes) per TPU generation."""
    try:
        kind = jax.devices()[0].device_kind.lower()
    except Exception:  # pragma: no cover - e.g. when querying devices fails
        kind = ""
    if "v5 lite" in kind or "v5e" in kind or "v5litepod" in kind:
        return 2 << 20, 32 << 20      # 128 MiB physical; raise the 16 MiB scoped default
    if "v6" in kind or "trillium" in kind:
        return 4 << 20, 48 << 20      # cut per-step overhead to ~5% of DMA time
    if "v7" in kind:
        return 3 << 20, 28 << 20      # only 64 MiB VMEM per TensorCore, both TCs active
    return 2 << 20, 32 << 20


def _wbce_partials_kernel(x_ref, t_ref, out_ref, *, tile_rows, lanes, rows_valid_last):
    """One (tile_rows, lanes) tile -> (1, 2, 8, lanes) UNWEIGHTED partial sums.

    out[0] = column-wise partial of   t   * log(x)
    out[1] = column-wise partial of (1-t) * log(1-x)
    Class weights are applied to these tiny partials in the XLA epilogue.
    """
    x = x_ref[...].astype(jnp.float32)
    t = t_ref[...].astype(jnp.float32)
    # No clamping: matches the reference (x==0/1 yields -inf/NaN just like torch).
    pos = t * jnp.log(x)
    neg = (1.0 - t) * jnp.log(1.0 - x)

    def fold(v):
        # (tile_rows, lanes) -> (8, lanes): pure VALU adds over aligned vregs
        # (no per-step cross-lane XLU reduce).
        return jnp.sum(v.reshape(tile_rows // _SUBLANE, _SUBLANE, lanes), axis=0)

    if rows_valid_last == tile_rows:
        # Row tile divides R: every tile fully valid, no masking anywhere.
        out_ref[0, 0] = fold(pos)
        out_ref[0, 1] = fold(neg)
    else:
        is_last = pl.program_id(0) == pl.num_programs(0) - 1

        @pl.when(jnp.logical_not(is_last))
        def _():
            out_ref[0, 0] = fold(pos)
            out_ref[0, 1] = fold(neg)

        @pl.when(is_last)
        def _():
            # Only the final tile overhangs R; mask its out-of-range rows
            # (overhang content is unspecified -> select drops it, NaN-safe).
            row = lax.broadcasted_iota(jnp.int32, (tile_rows, lanes), 0)
            valid = row < rows_valid_last
            out_ref[0, 0] = fold(jnp.where(valid, pos, 0.0))
            out_ref[0, 1] = fold(jnp.where(valid, neg, 0.0))


def _plain_loss(x, target, pos_weight, weight):
    xf = x.astype(jnp.float32)
    tf = target.astype(jnp.float32)
    loss = -pos_weight * tf * jnp.log(xf) - (1.0 - tf) * jnp.log(1.0 - xf)
    if weight is not None:
        loss = loss * weight
    return loss


def weighted_bce_loss(x, target, pos_weight=1.0, weight=None,
                      size_average=True, reduce=True,
                      pos_weight_is_dynamic=False,
                      tile_rows=None, min_pallas_elements=256 * 1024,
                      max_pack_lanes=32 * 1024):
    """Pallas TPU implementation of WeightedBCELoss.forward."""
    if x.shape != target.shape:
        raise ValueError(
            f"Target size ({target.shape}) must be the same as input size ({x.shape})")

    c = int(x.shape[-1])
    total = int(x.size)
    n_rows = total // c

    if pos_weight_is_dynamic:
        positive_counts = target.astype(jnp.float32).sum(axis=0)
        n_batch = target.shape[0]
        pos_weight = (n_batch - positive_counts) / (positive_counts + 1e-5)

    pos_weight = jnp.asarray(pos_weight, jnp.float32)
    weight_arr = None if weight is None else jnp.asarray(weight, jnp.float32)

    if not reduce:
        # TODO(synk): unreduced output is pure elementwise; XLA's fusion is optimal.
        return _plain_loss(x, target, pos_weight, weight_arr)

    def _is_per_class(wv):
        return wv is None or int(wv.size) in (1, c)

    # Lane-dense packing: L = lcm(C, 128) so per-class weights are column-periodic.
    pack_k = _LANE // math.gcd(c, _LANE)          # rows of C per super-row
    pack_l = c * pack_k                           # = lcm(C, 128), multiple of 128

    use_kernel = (
        total >= min_pallas_elements
        and _is_per_class(pos_weight)
        and _is_per_class(weight_arr)
        and pack_l <= max_pack_lanes
        and (n_rows // pack_k) >= _SUBLANE
    )

    if not use_kernel:
        # Tiny problems / exotic weight shapes: plain fused XLA path (exact).
        s = jnp.sum(_plain_loss(x, target, pos_weight, weight_arr))
        return s / jnp.float32(total) if size_average else s

    # ---- Pallas path -------------------------------------------------------
    x2 = x.reshape(n_rows, c)
    t2 = target.reshape(n_rows, c)

    main_rows = (n_rows // pack_k) * pack_k
    r = main_rows // pack_k                       # super-rows of width pack_l

    if main_rows == n_rows:
        x_m, t_m = x2, t2                         # pure reshape below, zero copy
        tail_sum = jnp.float32(0.0)
    else:
        # Tiny natural tail (< pack_l elements) in plain JAX; no jnp.pad copy.
        x_m, t_m = x2[:main_rows], t2[:main_rows]
        tail_sum = jnp.sum(_plain_loss(x2[main_rows:], t2[main_rows:],
                                       pos_weight, weight_arr))

    x_p = x_m.reshape(r, pack_l)
    t_p = t_m.reshape(r, pack_l)

    # Tile sizing: dtype-aware (bf16 doubles rows per byte) and per-generation,
    # kept under the scoped-VMEM limit including the in-kernel f32 temporaries.
    itemsize = max(jnp.dtype(x.dtype).itemsize, jnp.dtype(target.dtype).itemsize)
    tile_target, vmem_limit = _tile_config()
    if tile_rows is None:
        tile_r = (tile_target // (pack_l * itemsize)) // _SUBLANE * _SUBLANE
    else:
        tile_r = _round_up(int(tile_rows), _SUBLANE)
    # 2 inputs x 2 pipeline buffers at input dtype + ~4 f32 tiles of temporaries.
    per_row_bytes = pack_l * (4 * itemsize + 16)
    tile_cap = (int(vmem_limit * 0.7) // per_row_bytes) // _SUBLANE * _SUBLANE
    tile_r = max(_SUBLANE, min(tile_r, tile_cap, (r // _SUBLANE) * _SUBLANE))

    num_tiles = -(-r // tile_r)
    rows_valid_last = r - (num_tiles - 1) * tile_r   # in (0, tile_r]

    kernel = functools.partial(
        _wbce_partials_kernel,
        tile_rows=tile_r, lanes=pack_l, rows_valid_last=rows_valid_last)

    partials = pl.pallas_call(
        kernel,
        out_shape=jax.ShapeDtypeStruct((num_tiles, 2, _SUBLANE, pack_l), jnp.float32),
        grid_spec=pltpu.PrefetchScalarGridSpec(
            num_scalar_prefetch=0,
            grid=(num_tiles,),
            in_specs=[
                pl.BlockSpec((tile_r, pack_l), lambda i: (i, 0)),
                pl.BlockSpec((tile_r, pack_l), lambda i: (i, 0)),
            ],
            out_specs=pl.BlockSpec((1, 2, _SUBLANE, pack_l), lambda i: (i, 0, 0, 0)),
        ),
        compiler_params=pltpu.CompilerParams(
            dimension_semantics=("parallel",),    # independent tiles -> v7x megacore
            vmem_limit_bytes=int(vmem_limit)),
    )(x_p, t_p)

    # ---- Tiny XLA epilogue: apply class weights to the (8, pack_l) partials.
    p_pos = jnp.sum(partials[:, 0], axis=(0, 1))     # (pack_l,) sum of t*log(x)
    p_neg = jnp.sum(partials[:, 1], axis=(0, 1))     # (pack_l,) sum of (1-t)*log(1-x)

    pw_col = jnp.broadcast_to(pos_weight.reshape(-1), (c,))
    w_col = (jnp.ones((c,), jnp.float32) if weight_arr is None
             else jnp.broadcast_to(weight_arr.reshape(-1), (c,)))
    a_pat = jnp.tile(pw_col * w_col, pack_k)         # per-column positive weight
    b_pat = jnp.tile(w_col, pack_k)                  # per-column negative weight

    s = -(jnp.sum(a_pat * p_pos) + jnp.sum(b_pat * p_neg)) + tail_sum
    if size_average:
        return s / jnp.float32(total)
    return s


def _reference(x, t, pw, w, size_average=True, reduce=True):
    xf = jnp.asarray(x, jnp.float32)
    tf = jnp.asarray(t, jnp.float32)
    pw = jnp.asarray(pw, jnp.float32)
    loss = -pw * tf * jnp.log(xf) - (1.0 - tf) * jnp.log(1.0 - xf)
    if w is not None:
        loss = loss * jnp.asarray(w, jnp.float32)
    if not reduce:
        return loss
    return jnp.mean(loss) if size_average else jnp.sum(loss)


if __name__ == "__main__":
    key = jax.random.PRNGKey(0)
    k1, k2, k3, k4, k5, k6 = jax.random.split(key, 6)

    # ---- Test 1: zero-copy path (C=32 -> pack_l=128, N % 4 == 0), per-class
    #      weights, multi-tile grid, mean and sum reductions.
    N1, C1 = 256, 32
    probs1 = jax.nn.sigmoid(jax.random.normal(k1, (N1, C1), dtype=jnp.float32))
    target1 = (jax.random.uniform(k2, (N1, C1)) > 0.5).astype(jnp.float32)
    pos_w1 = jnp.linspace(0.5, 2.0, C1, dtype=jnp.float32).reshape(1, C1)
    w1 = jnp.linspace(1.0, 1.5, C1, dtype=jnp.float32).reshape(1, C1)

    out1 = jax.block_until_ready(
        weighted_bce_loss(probs1, target1, pos_w1, w1,
                          tile_rows=16, min_pallas_elements=0))
    ref1 = _reference(probs1, target1, pos_w1, w1)
    assert jnp.allclose(out1, ref1, rtol=1e-5, atol=1e-5), (out1, ref1)

    out1s = jax.block_until_ready(
        weighted_bce_loss(probs1, target1, pos_w1, w1, size_average=False,
                          tile_rows=16, min_pallas_elements=0))
    ref1s = _reference(probs1, target1, pos_w1, w1, size_average=False)
    assert jnp.allclose(out1s, ref1s, rtol=1e-5, atol=1e-3), (out1s, ref1s)

    # ---- Test 2: C=24 (pack_l=384), N=1000 -> plain-JAX natural tail (8 rows)
    #      AND pl.when-gated last-tile row mask (R=62, tile=16); scalar pw.
    N2, C2 = 1000, 24
    probs2 = jax.nn.sigmoid(jax.random.normal(k3, (N2, C2), dtype=jnp.float32))
    target2 = (jax.random.uniform(k4, (N2, C2)) > 0.5).astype(jnp.float32)
    out2 = jax.block_until_ready(
        weighted_bce_loss(probs2, target2, pos_weight=1.5, weight=None,
                          tile_rows=16, min_pallas_elements=0))
    ref2 = _reference(probs2, target2, 1.5, None)
    assert jnp.allclose(out2, ref2, rtol=1e-5, atol=1e-5), (out2, ref2)

    # ---- Test 3: bf16 inputs through the kernel (dtype-aware tiling path).
    probs3 = jnp.clip(jax.nn.sigmoid(jax.random.normal(k5, (512, 32))),
                      0.01, 0.99).astype(jnp.bfloat16)
    target3 = (jax.random.uniform(k6, (512, 32)) > 0.5).astype(jnp.bfloat16)
    out3 = jax.block_until_ready(
        weighted_bce_loss(probs3, target3, pos_weight=2.0, weight=None,
                          min_pallas_elements=0))
    ref3 = _reference(probs3, target3, 2.0, None)
    assert jnp.allclose(out3, ref3, rtol=2e-3, atol=2e-3), (out3, ref3)

    # ---- Test 4: reduce=False (plain-JAX elementwise path).
    out4 = jax.block_until_ready(
        weighted_bce_loss(probs1, target1, pos_w1, w1, reduce=False))
    ref4 = _reference(probs1, target1, pos_w1, w1, reduce=False)
    assert jnp.allclose(out4, ref4, rtol=1e-5, atol=1e-6)

    print("KERNEL_OK")
</pallas_src>

<mosaic_0001>
module attributes {stable_mosaic.version = 11 : i64} {
  func.func @_wbce_partials_kernel(%arg0: i32, %arg1: memref<16x128xf32, #tpu.memory_space<vmem>>, %arg2: memref<16x128xf32, #tpu.memory_space<vmem>>, %arg3: memref<1x2x8x128xf32, #tpu.memory_space<vmem>>) attributes {dimension_semantics = [#tpu.dimension_semantics<parallel>], iteration_bounds = array<i64: 4>, scalar_prefetch = 0 : i64, scratch_operands = 0 : i64, tpu.core_type = #tpu.core_type<tc>, window_params = [{transform_indices = @transform_0, window_bounds = array<i64: 16, 128>}, {transform_indices = @transform_1, window_bounds = array<i64: 16, 128>}, {transform_indices = @transform_2, window_bounds = array<i64: 1, 2, 8, 128>}]} {
    %c0 = arith.constant 0 : index
    %c0_0 = arith.constant 0 : index
    %0 = vector.load %arg1[%c0, %c0_0] : memref<16x128xf32, #tpu.memory_space<vmem>>, vector<16x128xf32>
    %c0_1 = arith.constant 0 : index
    %c0_2 = arith.constant 0 : index
    %1 = vector.load %arg2[%c0_1, %c0_2] : memref<16x128xf32, #tpu.memory_space<vmem>>, vector<16x128xf32>
    %2 = math.log %0 : vector<16x128xf32>
    %3 = arith.mulf %1, %2 : vector<16x128xf32>
    %cst = arith.constant 1.000000e+00 : f32
    %4 = vector.broadcast %cst : f32 to vector<16x128xf32>
    %5 = arith.subf %4, %1 : vector<16x128xf32>
    %cst_3 = arith.constant 1.000000e+00 : f32
    %6 = vector.broadcast %cst_3 : f32 to vector<16x128xf32>
    %7 = arith.subf %6, %0 : vector<16x128xf32>
    %8 = math.log %7 : vector<16x128xf32>
    %9 = arith.mulf %5, %8 : vector<16x128xf32>
    %10 = vector.shape_cast %3 : vector<16x128xf32> to vector<2x8x128xf32>
    %cst_4 = arith.constant dense<0.000000e+00> : vector<8x128xf32>
    %11 = vector.multi_reduction <add>, %10, %cst_4 [0] : vector<2x8x128xf32> to vector<8x128xf32>
    %c0_5 = arith.constant 0 : index
    %c0_6 = arith.constant 0 : index
    %c0_7 = arith.constant 0 : index
    %c0_8 = arith.constant 0 : index
    %12 = vector.load %arg3[%c0_5, %c0_6, %c0_7, %c0_8] : memref<1x2x8x128xf32, #tpu.memory_space<vmem>>, vector<1x1x8x128xf32>
    %13 = vector.shape_cast %12 : vector<1x1x8x128xf32> to vector<8x128xf32>
    %14 = vector.shape_cast %11 : vector<8x128xf32> to vector<1x1x8x128xf32>
    tpu.vector_store %arg3[%c0_5, %c0_6, %c0_7, %c0_8], %14 {strides = array<i32>} : memref<1x2x8x128xf32, #tpu.memory_space<vmem>>, vector<1x1x8x128xf32>,
    %15 = vector.shape_cast %9 : vector<16x128xf32> to vector<2x8x128xf32>
    %cst_9 = arith.constant dense<0.000000e+00> : vector<8x128xf32>
    %16 = vector.multi_reduction <add>, %15, %cst_9 [0] : vector<2x8x128xf32> to vector<8x128xf32>
    %c0_10 = arith.constant 0 : index
    %c1 = arith.constant 1 : index
    %c0_11 = arith.constant 0 : index
    %c0_12 = arith.constant 0 : index
    %17 = vector.load %arg3[%c0_10, %c1, %c0_11, %c0_12] : memref<1x2x8x128xf32, #tpu.memory_space<vmem>>, vector<1x1x8x128xf32>
    %18 = vector.shape_cast %17 : vector<1x1x8x128xf32> to vector<8x128xf32>
    %19 = vector.shape_cast %16 : vector<8x128xf32> to vector<1x1x8x128xf32>
    tpu.vector_store %arg3[%c0_10, %c1, %c0_11, %c0_12], %19 {strides = array<i32>} : memref<1x2x8x128xf32, #tpu.memory_space<vmem>>, vector<1x1x8x128xf32>,
    return
  }
  func.func @transform_0(%arg0: i32) -> (i32, i32) {
    %c0_i32 = arith.constant 0 : i32
    %c0_i32_0 = arith.constant 0 : i32
    return %arg0, %c0_i32 : i32, i32
  }
  func.func @transform_1(%arg0: i32) -> (i32, i32) {
    %c0_i32 = arith.constant 0 : i32
    %c0_i32_0 = arith.constant 0 : i32
    return %arg0, %c0_i32 : i32, i32
  }
  func.func @transform_2(%arg0: i32) -> (i32, i32, i32, i32) {
    %c0_i32 = arith.constant 0 : i32
    %c0_i32_0 = arith.constant 0 : i32
    %c0_i32_1 = arith.constant 0 : i32
    %c0_i32_2 = arith.constant 0 : i32
    return %arg0, %c0_i32, %c0_i32_0, %c0_i32_1 : i32, i32, i32, i32
  }
}

</mosaic_0001>

<llo_original>
// kernel: tpu_custom_call.1
$region0: #{tpu_custom_call.1}
  #allocation0 [shape = 'u32[]', space=smem, size = 0x4, offset = 0x4, fixed_abs, tag = 'smem constant byte address 0x4 - core index']
  #allocation1 [shape = 'u32[144,128]{1,0:T(1,128)}', space=vmem, size = 0x12000, scoped, tag = 'internal scratch']
  %s0 = inlined_call_operand.hbm [shape: f32[64,128], index: 0, kind: input, shape index: {}]
  %s1 = inlined_call_operand.hbm [shape: f32[64,128], index: 1, kind: input, shape index: {}]
  %s2 = inlined_call_operand.hbm [shape: f32[4,2,8,128], index: 2, kind: output, shape index: {}]
  %s3 = sld [smem:[#allocation0]]
  $region49: #{tpu_custom_call.1} parent=0
    _
  %s5 = ssub.s32 1, %s3
  %s6 = scalar_select 0, %s5, %s3
  $region1: #{tpu_custom_call.1} parent=0
    #allocation2 [shape = 'u8[16384]{0}', space=vmem, size = 0x4000, scoped, tag = 'input window, operand 0']
    #allocation3 [shape = 's32[2]{0}', space=sflag, size = 0x8, scoped, tag = 'scoped memory for tpu_custom_call.1']
    #allocation4 [shape = 's32[2]{0}', space=sflag, size = 0x8, scoped, tag = 'scoped memory for tpu_custom_call.1']
    #allocation5 [shape = 'u8[16384]{0}', space=vmem, size = 0x4000, scoped, tag = 'input window, operand 1']
    #allocation6 [shape = 's32[2]{0}', space=sflag, size = 0x8, scoped, tag = 'scoped memory for tpu_custom_call.1']
    #allocation7 [shape = 'u8[16384]{0}', space=vmem, size = 0x4000, scoped, tag = 'output window, operand 0']
    %7 = vsyncpa [#allocation3], 0
    %s8 = scalar_lea.sflag [#allocation3], 1
    %9 = vsyncpa %s8, 0
    %10 = vsyncpa [#allocation6], 0
    %s11 = scalar_lea.sflag [#allocation6], 1
    %12 = vsyncpa %s11, 0
    %13 = vsyncpa [#allocation4], 0
    %s14 = scalar_lea.sflag [#allocation4], 1
    %15 = vsyncpa %s14, 0
    loop: start=0, step=1, limit=6
    $region2: #{tpu_custom_call.1} parent=1 // loop_pre_header
      _
    $region3: #{tpu_custom_call.1} parent=1 // loop_header
      %s17 = sphi 0, %s21
      %p18 = scmp.ge.s32.totalorder %s17, 6
      %s27 = sphi 0, %s29
      %s30 = sphi 0, %s27
      %s31 = sphi 0, %s30
      %s47 = sphi 0, %s31
      %s53 = sphi 0, %s55
      %s56 = sphi 0, %s53
      %s57 = sphi 0, %s56
      %s73 = sphi 0, %s57
      %s79 = sphi 0, %s81
      %s82 = sphi 0, %s79
      %s83 = sphi 0, %s82
      %s99 = sphi 0, %s83
    $region4: #{tpu_custom_call.1} parent=1 // loop_header_branch
      %20 = sbr.rel (%p18) target = $region8
    $region5: #{tpu_custom_call.1} parent=1 // loop_body
      %s22 = ssub.s32 %s17, 1
      %s23 = ssub.s32 %s17, 2
      %s24 = sadd.s32 %s17, 1
      %s25 = ssub.s32 %s17, %s24
      %p26 = scmp.eq.s32.totalorder %s25, 0
      %s28 = sadd.s32 %s27, 1
      %s29 = scalar_select %p26, %s27, %s28
      %p32 = pneg %p26
      %p33 = scmp.eq.s32.totalorder %s17, 3
      %p34 = por %p32, %p33
      %p35 = scmp.ne.s32.totalorder %s27, %s30
      %p36 = scmp.eq.s32.totalorder %s17, 0
      %p37 = por %p35, %p36
      %p38 = scmp.ne.s32.totalorder %s27, %s30
      %p39 = scmp.eq.s32.totalorder %s22, 3
      %p40 = por %p38, %p39
      %p41 = scmp.ne.s32.totalorder %s30, %s31
      %p42 = scmp.eq.s32.totalorder %s22, 0
      %p43 = por %p41, %p42
      %p44 = scmp.ne.s32.totalorder %s30, %s31
      %p45 = scmp.eq.s32.totalorder %s23, 3
      %p46 = por %p44, %p45
      %p48 = scmp.ne.s32.totalorder %s31, %s47
      %p49 = scmp.eq.s32.totalorder %s23, 0
      %p50 = por %p48, %p49
      %s51 = ssub.s32 %s17, %s24
      %p52 = scmp.eq.s32.totalorder %s51, 0
      %s54 = sadd.s32 %s53, 1
      %s55 = scalar_select %p52, %s53, %s54
      %p58 = pneg %p52
      %p59 = scmp.eq.s32.totalorder %s17, 3
      %p60 = por %p58, %p59
      %p61 = scmp.ne.s32.totalorder %s53, %s56
      %p62 = scmp.eq.s32.totalorder %s17, 0
      %p63 = por %p61, %p62
      %p64 = scmp.ne.s32.totalorder %s53, %s56
      %p65 = scmp.eq.s32.totalorder %s22, 3
      %p66 = por %p64, %p65
      %p67 = scmp.ne.s32.totalorder %s56, %s57
      %p68 = scmp.eq.s32.totalorder %s22, 0
      %p69 = por %p67, %p68
      %p70 = scmp.ne.s32.totalorder %s56, %s57
      %p71 = scmp.eq.s32.totalorder %s23, 3
      %p72 = por %p70, %p71
      %p74 = scmp.ne.s32.totalorder %s57, %s73
      %p75 = scmp.eq.s32.totalorder %s23, 0
      %p76 = por %p74, %p75
      %s77 = ssub.s32 %s17, %s24
      %p78 = scmp.eq.s32.totalorder %s77, 0
      %s80 = sadd.s32 %s79, 1
      %s81 = scalar_select %p78, %s79, %s80
      %p84 = pneg %p78
      %p85 = scmp.eq.s32.totalorder %s17, 3
      %p86 = por %p84, %p85
      %p87 = scmp.ne.s32.totalorder %s79, %s82
      %p88 = scmp.eq.s32.totalorder %s17, 0
      %p89 = por %p87, %p88
      %p90 = scmp.ne.s32.totalorder %s79, %s82
      %p91 = scmp.eq.s32.totalorder %s22, 3
      %p92 = por %p90, %p91
      %p93 = scmp.ne.s32.totalorder %s82, %s83
      %p94 = scmp.eq.s32.totalorder %s22, 0
      %p95 = por %p93, %p94
      %p96 = scmp.ne.s32.totalorder %s82, %s83
      %p97 = scmp.eq.s32.totalorder %s23, 3
      %p98 = por %p96, %p97
      %p100 = scmp.ne.s32.totalorder %s83, %s99
      %p101 = scmp.eq.s32.totalorder %s23, 0
      %p102 = por %p100, %p101
      %p103 = scmp.le.s32.totalorder 1, %s17
      %p104 = scmp.lt.s32.totalorder %s17, 5
      %p105 = pnand %p103, %p104
      %p106 = pneg %p105
      // Predicated region
      $region9: #{tpu_custom_call.1} parent=5 // pred_check
        _
      $region10: #{tpu_custom_call.1} parent=5 // pred_check_branch
        %108 = sbr.rel (%p105) target = $region12
      $region11: #{tpu_custom_call.1} parent=5 // pred_region
        %s109 = ssub.s32 %s17, 1
      $region12: #{tpu_custom_call.1} parent=5 // pred_fallthru
        _
      %p110 = scmp.lt.s32.totalorder %s17, 4
      // Predicated region
      $region13: #{tpu_custom_call.1} parent=5 // pred_check
        %p111 = pneg %p110
      $region14: #{tpu_custom_call.1} parent=5 // pred_check_branch
        %113 = sbr.rel (%p111) target = $region16
      $region15: #{tpu_custom_call.1} parent=5 // pred_region
        // Predicated region
        $region17: #{tpu_custom_call.1} parent=15 // pred_check
          %p114 = pneg %p37
        $region18: #{tpu_custom_call.1} parent=15 // pred_check_branch
          %116 = sbr.rel (%p114) target = $region20
        $region19: #{tpu_custom_call.1} parent=15 // pred_region
          %s117 = sand.u32 %s27, 1
          %s118 = scalar_lea.sflag [#allocation3], %s117
          %s119 = sand.u32 %s27, 1
          %s120 = smul.addr %s119, 16
          %s121 = scalar_lea.vmem [#allocation2], %s120
          %s122 = smul.u32 2, %s17
          %s124 = ssub.s32 256, 256
          %125 = vsyncadd %s118, %s124
          %s126 = smul.addr %s122, 128
          %s127 = scalar_lea.hbm %s0, %s126
          %s128 = sshll.u32 %s121, 4
          %s129 = int_to_ptr.vmem [resolvable:$true] %s128
          %134 = dma.hbm_to_vmem [thread:$0]  %s127, 256, %s129, %s118, 128, 128, 8
        $region20: #{tpu_custom_call.1} parent=15 // pred_fallthru
          _
        // Predicated region
        $region21: #{tpu_custom_call.1} parent=15 // pred_check
          %p135 = pneg %p63
        $region22: #{tpu_custom_call.1} parent=15 // pred_check_branch
          %137 = sbr.rel (%p135) target = $region24
        $region23: #{tpu_custom_call.1} parent=15 // pred_region
          %s138 = sand.u32 %s53, 1
          %s139 = scalar_lea.sflag [#allocation6], %s138
          %s140 = sand.u32 %s53, 1
          %s141 = smul.addr %s140, 16
          %s142 = scalar_lea.vmem [#allocation5], %s141
          %s143 = smul.u32 2, %s17
          %s145 = ssub.s32 256, 256
          %146 = vsyncadd %s139, %s145
          %s147 = smul.addr %s143, 128
          %s148 = scalar_lea.hbm %s1, %s147
          %s149 = sshll.u32 %s142, 4
          %s150 = int_to_ptr.vmem [resolvable:$true] %s149
          %155 = dma.hbm_to_vmem [thread:$0]  %s148, 256, %s150, %s139, 128, 128, 8
        $region24: #{tpu_custom_call.1} parent=15 // pred_fallthru
          _
      $region16: #{tpu_custom_call.1} parent=5 // pred_fallthru
        _
      %p156 = scmp.le.s32.totalorder 1, %s17
      %p157 = scmp.lt.s32.totalorder %s17, 5
      %p158 = pnand %p156, %p157
      %p159 = pneg %p158
      // Predicated region
      $region25: #{tpu_custom_call.1} parent=5 // pred_check
        _
      $region26: #{tpu_custom_call.1} parent=5 // pred_check_branch
        %161 = sbr.rel (%p158) target = $region28
      $region27: #{tpu_custom_call.1} parent=5 // pred_region
        %s162 = ssub.s32 %s17, 1
        %s163 = sand.u32 %s30, 1
        %s164 = scalar_lea.sflag [#allocation3], %s163
        %s165 = sand.u32 %s30, 1
        %s166 = smul.addr %s165, 16
        %s167 = scalar_lea.vmem [#allocation2], %s166
        // Predicated region
        $region29: #{tpu_custom_call.1} parent=27 // pred_check
          %p168 = pneg %p43
        $region30: #{tpu_custom_call.1} parent=27 // pred_check_branch
          %170 = sbr.rel (%p168) target = $region32
        $region31: #{tpu_custom_call.1} parent=27 // pred_region
          %171 = dma.done %s164, 256
        $region32: #{tpu_custom_call.1} parent=27 // pred_fallthru
          _
        %s172 = sand.u32 %s56, 1
        %s173 = scalar_lea.sflag [#allocation6], %s172
        %s174 = sand.u32 %s56, 1
        %s175 = smul.addr %s174, 16
        %s176 = scalar_lea.vmem [#allocation5], %s175
        // Predicated region
        $region33: #{tpu_custom_call.1} parent=27 // pred_check
          %p177 = pneg %p69
        $region34: #{tpu_custom_call.1} parent=27 // pred_check_branch
          %179 = sbr.rel (%p177) target = $region36
        $region35: #{tpu_custom_call.1} parent=27 // pred_region
          %180 = dma.done %s173, 256
        $region36: #{tpu_custom_call.1} parent=27 // pred_fallthru
          _
        %s181 = sand.u32 %s30, 1
        %s182 = scalar_lea.sflag [#allocation3], %s181
        %s183 = sand.u32 %s30, 1
        %s184 = smul.addr %s183, 16
        %s185 = scalar_lea.vmem [#allocation2], %s184
        %p186 = pneg %p43
        %p187 = pneg %p40
        %s188 = sand.u32 %s56, 1
        %s189 = scalar_lea.sflag [#allocation6], %s188
        %s190 = sand.u32 %s56, 1
        %s191 = smul.addr %s190, 16
        %s192 = scalar_lea.vmem [#allocation5], %s191
        %p193 = pneg %p69
        %p194 = pneg %p66
        %p195 = pneg %p95
        %p196 = pneg %p92
        %s197 = sand.u32 %s82, 1
        %s198 = scalar_lea.sflag [#allocation4], %s197
        %s199 = sand.u32 %s82, 1
        %s200 = smul.addr %s199, 16
        %s201 = scalar_lea.vmem [#allocation7], %s200
        %s202 = smul.u32 2, %s22
        %s203 = smul.u32 2, %s22
        %v204 = vld [vmem:[%s167] sm:$0xff]
        %v205 = vld [vmem:[%s167 + $0x8] sm:$0xff]
        %v206 = vld [vmem:[%s176] sm:$0xff]
        %v207 = vld [vmem:[%s176 + $0x8] sm:$0xff]
        %v208 = vlog2.pop %v204
        %v209 = vmul.f32 %v208, 0.6931472
        %v210 = vlog2.pop %v205
        %v211 = vmul.f32 %v210, 0.6931472
        %v212 = vmul.f32 %v206, %v209
        %v213 = vmul.f32 %v207, %v211
        %v214 = vsub.f32 1.0, %v206
        %v215 = vsub.f32 1.0, %v207
        %v216 = vsub.f32 1.0, %v204
        %v217 = vsub.f32 1.0, %v205
        %v218 = vlog2.pop %v216
        %v219 = vmul.f32 %v218, 0.6931472
        %v220 = vlog2.pop %v217
        %v221 = vmul.f32 %v220, 0.6931472
        %v222 = vmul.f32 %v214, %v219
        %v223 = vmul.f32 %v215, %v221
        %v224 = vadd.f32 %v212, %v213
        %225 = vst [vmem:[%s201] sm:$0xff] %v224
        %v226 = vadd.f32 %v222, %v223
        %s227 = scalar_lea.vmem %s201, 8 [#allocation7]
        %228 = vst [vmem:[%s227] sm:$0xff] %v226
        %s229 = sand.u32 %s82, 1
        %s230 = scalar_lea.sflag [#allocation4], %s229
        %s231 = sand.u32 %s82, 1
        %s232 = smul.addr %s231, 16
        %s233 = scalar_lea.vmem [#allocation7], %s232
        // Predicated region
        $region37: #{tpu_custom_call.1} parent=27 // pred_check
          %p234 = pneg %p92
        $region38: #{tpu_custom_call.1} parent=27 // pred_check_branch
          %236 = sbr.rel (%p234) target = $region40
        $region39: #{tpu_custom_call.1} parent=27 // pred_region
          %s238 = ssub.s32 256, 256
          %239 = vsyncadd %s230, %s238
          %s240 = smul.addr %s22, 2
          %s241 = smul.addr %s240, 128
          %s242 = scalar_lea.hbm %s2, %s241
          %s243 = sshll.u32 %s233, 4
          %s244 = int_to_ptr.vmem [resolvable:$true] %s243
          %249 = dma.vmem_to_hbm [thread:$0]  %s244, 256, %s242, %s230, 128, 128, 8
        $region40: #{tpu_custom_call.1} parent=27 // pred_fallthru
          _
      $region28: #{tpu_custom_call.1} parent=5 // pred_fallthru
        _
      %p250 = scmp.le.s32.totalorder 2, %s17
      // Predicated region
      $region41: #{tpu_custom_call.1} parent=5 // pred_check
        %p251 = pneg %p250
      $region42: #{tpu_custom_call.1} parent=5 // pred_check_branch
        %253 = sbr.rel (%p251) target = $region44
      $region43: #{tpu_custom_call.1} parent=5 // pred_region
        %s254 = ssub.s32 %s17, 2
        // Predicated region
        $region45: #{tpu_custom_call.1} parent=43 // pred_check
          %p255 = pneg %p98
        $region46: #{tpu_custom_call.1} parent=43 // pred_check_branch
          %257 = sbr.rel (%p255) target = $region48
        $region47: #{tpu_custom_call.1} parent=43 // pred_region
          %s258 = sand.u32 %s83, 1
          %s259 = scalar_lea.sflag [#allocation4], %s258
          %s260 = sand.u32 %s83, 1
          %s261 = smul.addr %s260, 16
          %s262 = scalar_lea.vmem [#allocation7], %s261
          %263 = dma.done %s259, 256
        $region48: #{tpu_custom_call.1} parent=43 // pred_fallthru
          _
      $region44: #{tpu_custom_call.1} parent=5 // pred_fallthru
        _
    $region6: #{tpu_custom_call.1} parent=1 // loop_footer
      %s21 = sadd.s32 1, %s17
    $region7: #{tpu_custom_call.1} parent=1 // loop_footer_branch
      %16 = sbr.rel target = $region3
    $region8: #{tpu_custom_call.1} parent=1 // loop_exit
      _
    %264 = vsyncpa [#allocation3], 1
    %s265 = scalar_lea.sflag [#allocation3], 1
    %266 = vsyncpa %s265, 1
    %267 = vsyncpa [#allocation6], 1
    %s268 = scalar_lea.sflag [#allocation6], 1
    %269 = vsyncpa %s268, 1
    %270 = vsyncpa [#allocation4], 1
    %s271 = scalar_lea.sflag [#allocation4], 1
    %272 = vsyncpa %s271, 1

</llo_original>
